<compile_context>
chip_gen: v7x
topology: tpu7x:2x2x1
jax: 0.10.0
libtpu: 0.0.40
codegen_flags: <defaults>
</compile_context>

<pallas_src>
import jax
import jax.numpy as jnp
from jax.experimental import pallas as pl
from jax.experimental.pallas import tpu as pltpu


# Tile budget in ELEMENTS (the f32 scratch accumulators are tile-shaped, so this
# pins VMEM use regardless of the streaming dtype):
#   inputs : 3 x 2 buffers x TE x itemsize  (12 MiB f32 / 6 MiB bf16 at TE=512K)
#   scratch: 2 x TE x 4 bytes               (4 MiB)
_TARGET_TILE_ELEMS = 512 * 1024


def _cdiv(a, b):
    return -(-a // b)


def _tensorcores_per_chip():
    """Best-effort TensorCores-per-chip (v5e/v6e: 1, v4/v5p/v7x: 2)."""
    try:
        kind = jax.devices()[0].device_kind.lower()
    except Exception:
        return 1
    if "lite" in kind or "v5e" in kind or "v6e" in kind:
        return 1
    if any(tag in kind for tag in ("v4", "v5p", "v5 p", "7x", "v7")):
        return 2
    return 1


def _vmem_limit_bytes():
    limit = 40 * 1024 * 1024
    try:
        cap = int(pltpu.get_tpu_info().vmem_capacity_bytes)
        limit = min(limit, int(cap * 0.75))
    except Exception:
        pass
    return limit


def _pick_blocks(B, N, block_rows, block_cols):
    """Choose (Bb, Nb) respecting the (8, 128) tiling rule and the VMEM budget."""
    if block_cols is None:
        min_rows = B if B < 8 else 8
        if min_rows * N <= _TARGET_TILE_ELEMS:
            Nb = N                                   # lane-dense full flattened row
        else:
            Nb = max(128, (_TARGET_TILE_ELEMS // min_rows) // 128 * 128)
    else:
        Nb = int(block_cols)

    if block_rows is None:
        rows_fit = max(1, _TARGET_TILE_ELEMS // Nb)
        if rows_fit >= B:
            Bb = B
        else:
            Bb = min(max(8, (rows_fit // 8) * 8), B)  # multiple-of-8 sublane rule
    else:
        Bb = int(block_rows)

    assert Bb == B or (Bb % 8 == 0 and Bb <= B), (Bb, B)
    assert Nb == N or (Nb % 128 == 0 and Nb <= N), (Nb, N)
    return Bb, Nb


def _make_kernel(nb, Bb, Nb):
    """Kernel closure over compile-time constants."""

    def kernel(valid_ref, full_ref, limits_ref, after_ref, before_ref, ys_ref,
               out_ref, acc_l1, acc_mse):
        gb = pl.program_id(1)
        gn = pl.program_id(2)
        blk = pl.program_id(0) * pl.num_programs(1) + gb   # global batch block
        blk_c = jnp.minimum(blk, nb - 1)
        is_real = blk < nb
        n_valid = valid_ref[blk_c]   # column blocks with any valid element
        n_full = full_ref[blk_c]     # leading column blocks valid for every row

        # Zero this shard's resident accumulators at its first grid step.
        @pl.when(jnp.logical_and(gb == 0, gn == 0))
        def _():
            acc_l1[...] = jnp.zeros_like(acc_l1)
            acc_mse[...] = jnp.zeros_like(acc_mse)

        # Fast path: every row of the block is fully valid in this column tile,
        # so skip the iota/compare/select mask entirely (pure VPU).
        @pl.when(jnp.logical_and(is_real, gn < n_full))
        def _():
            av = after_ref[...].astype(jnp.float32)
            bv = before_ref[...].astype(jnp.float32)
            yv = ys_ref[...].astype(jnp.float32)
            da = av - yv
            db = bv - yv
            acc_l1[...] += jnp.abs(da) + jnp.abs(db)
            acc_mse[...] += da * da + db * db

        # Masked path: tile straddles one or more per-row limits (also handles
        # padded rows of the ragged last batch block, whose limit is 0).
        @pl.when(jnp.logical_and(is_real,
                                 jnp.logical_and(gn >= n_full, gn < n_valid)))
        def _():
            limit = limits_ref[...]                                  # (Bb, 1) int32
            col = jax.lax.broadcasted_iota(jnp.int32, (Bb, Nb), 1) + gn * Nb
            mask = col < limit
            av = after_ref[...].astype(jnp.float32)
            bv = before_ref[...].astype(jnp.float32)
            yv = ys_ref[...].astype(jnp.float32)
            da = jnp.where(mask, av - yv, 0.0)
            db = jnp.where(mask, bv - yv, 0.0)
            acc_l1[...] += jnp.abs(da) + jnp.abs(db)
            acc_mse[...] += da * da + db * db

        # Steps with gn >= n_valid (or duplicated tail batch blocks) contribute
        # nothing: the index_map pinned them onto an already-fetched tile, so
        # they cost neither DMA nor compute.

        # Reduce and store once per shard, as a single lane-dense 128-wide row.
        @pl.when(jnp.logical_and(gb == pl.num_programs(1) - 1,
                                 gn == pl.num_programs(2) - 1))
        def _():
            s_l1 = jnp.sum(acc_l1[...])
            s_mse = jnp.sum(acc_mse[...])
            lane = jax.lax.broadcasted_iota(jnp.int32, (1, 1, 128), 2)
            out_ref[...] = jnp.where(lane == 0, s_l1,
                                     jnp.where(lane == 1, s_mse, 0.0))

    return kernel


def tacotron2_loss(after_outs, before_outs, ys, olens, *, use_masking=True,
                   block_rows=None, block_cols=None, num_shards=None):
    """Returns (l1_loss, mse_loss) as in the PyTorch Tacotron2Loss module.

    after_outs/before_outs/ys: (B, Lmax, odim), any float dtype (bf16 streamed as-is).
    olens: (B,) int lengths.
    """
    # TODO(synk): use_weighted_masking=True branch (per-utterance weighted mask) not implemented.
    B, Lmax, odim = after_outs.shape
    N = Lmax * odim
    olens = jnp.asarray(olens, jnp.int32)

    # Lane-dense flattened layout.
    a2 = jnp.reshape(after_outs, (B, N))
    b2 = jnp.reshape(before_outs, (B, N))
    y2 = jnp.reshape(ys, (B, N))

    if use_masking:
        limits = (olens * odim).astype(jnp.int32)          # (B,)
    else:
        limits = jnp.full((B,), N, jnp.int32)

    Bb, Nb = _pick_blocks(B, N, block_rows, block_cols)
    nb = _cdiv(B, Bb)                       # number of batch blocks
    nn = _cdiv(N, Nb)                       # number of column blocks

    cores = _tensorcores_per_chip()
    P = int(num_shards) if num_shards is not None else cores
    P = max(1, min(P, nb))
    Gb = _cdiv(nb, P)                       # batch blocks per shard

    # Zero-pad per-row limits to whole batch blocks so garbage rows of the
    # ragged last block are masked by limit == 0 (no per-step row check).
    B_pad = nb * Bb
    limits_pad = jnp.zeros((B_pad,), jnp.int32).at[:B].set(limits)
    limits2 = limits_pad.reshape(B_pad, 1)

    # Scalar-prefetch summaries per batch block:
    #   valid_nblk: #column blocks containing any valid element (DMA-skip clamp)
    #   full_nblk : #leading column blocks fully valid for every row (fast path)
    lim_blocks = limits_pad.reshape(nb, Bb)
    valid_nblk = ((jnp.max(lim_blocks, axis=1) + (Nb - 1)) // Nb).astype(jnp.int32)
    full_nblk = (jnp.min(lim_blocks, axis=1) // Nb).astype(jnp.int32)

    def data_map(p, gb, gn, valid_nblk, full_nblk):
        blk = p * Gb + gb
        blk_c = jnp.minimum(blk, nb - 1)
        last_col = jnp.maximum(valid_nblk[blk_c] - 1, 0)
        # Padded column tiles repeat the last real column tile; duplicated tail
        # batch blocks pin onto the previous real tile -> Pallas skips the DMA.
        col = jnp.where(blk < nb, jnp.minimum(gn, last_col), last_col)
        return (blk_c, col)

    def lim_map(p, gb, gn, valid_nblk, full_nblk):
        return (jnp.minimum(p * Gb + gb, nb - 1), 0)

    out_map = lambda p, gb, gn, valid_nblk, full_nblk: (p, 0, 0)

    sums = pl.pallas_call(
        _make_kernel(nb, Bb, Nb),
        out_shape=jax.ShapeDtypeStruct((P, 1, 128), jnp.float32),
        grid_spec=pltpu.PrefetchScalarGridSpec(
            num_scalar_prefetch=2,
            grid=(P, Gb, nn),
            in_specs=[pl.BlockSpec((Bb, 1), lim_map),
                      pl.BlockSpec((Bb, Nb), data_map),
                      pl.BlockSpec((Bb, Nb), data_map),
                      pl.BlockSpec((Bb, Nb), data_map)],
            out_specs=pl.BlockSpec((1, 1, 128), out_map),
            scratch_shapes=[pltpu.VMEM((Bb, Nb), jnp.float32),
                            pltpu.VMEM((Bb, Nb), jnp.float32)],
        ),
        compiler_params=pltpu.CompilerParams(
            dimension_semantics=("parallel", "arbitrary", "arbitrary"),
            vmem_limit_bytes=_vmem_limit_bytes()),
    )(valid_nblk, full_nblk, limits2, a2, b2, y2)

    l1_sum = jnp.sum(sums[:, 0, 0])         # sum per-shard rows
    mse_sum = jnp.sum(sums[:, 0, 1])

    # masked_select broadcasts the (B, Lmax, 1) mask over odim, so each mean
    # divides by sum(olens) * odim.  (sum(olens)==0 -> NaN, same as PyTorch.)
    if use_masking:
        denom = (jnp.sum(olens) * odim).astype(jnp.float32)
    else:
        denom = jnp.float32(B * N)
    return l1_sum / denom, mse_sum / denom


def _reference(after, before, ys, olens, use_masking=True):
    """Pure-JAX reference mirroring the PyTorch masked_select + mean losses."""
    B, Lmax, odim = after.shape
    a = after.astype(jnp.float32)
    b = before.astype(jnp.float32)
    y = ys.astype(jnp.float32)
    if use_masking:
        mask = (jnp.arange(Lmax)[None, :] < olens[:, None])[:, :, None].astype(jnp.float32)
        n = jnp.sum(olens).astype(jnp.float32) * odim
    else:
        mask = jnp.ones((B, Lmax, 1), jnp.float32)
        n = jnp.float32(B * Lmax * odim)
    l1 = (jnp.sum(jnp.abs(a - y) * mask) + jnp.sum(jnp.abs(b - y) * mask)) / n
    mse = (jnp.sum(((a - y) ** 2) * mask) + jnp.sum(((b - y) ** 2) * mask)) / n
    return l1, mse


if __name__ == "__main__":
    # --- Test 1: small f32 batch, single block, default block picker ----------
    B, Lmax, odim = 2, 16, 8
    k1, k2, k3 = jax.random.split(jax.random.PRNGKey(0), 3)
    after = jax.random.normal(k1, (B, Lmax, odim), jnp.float32)
    before = jax.random.normal(k2, (B, Lmax, odim), jnp.float32)
    ys = jax.random.normal(k3, (B, Lmax, odim), jnp.float32)
    olens = jnp.array([16, 11], jnp.int32)     # second utterance is padded

    l1, mse = tacotron2_loss(after, before, ys, olens)
    jax.block_until_ready((l1, mse))
    l1_ref, mse_ref = _reference(after, before, ys, olens)
    assert jnp.allclose(l1, l1_ref, rtol=1e-5, atol=1e-5), (l1, l1_ref)
    assert jnp.allclose(mse, mse_ref, rtol=1e-5, atol=1e-5), (mse, mse_ref)

    # --- Test 2: bf16 inputs, forced small blocks, ragged row/column edge
    #             blocks, zero-length utterances, 2-way shard split ------------
    B2, Lmax2, odim2 = 12, 24, 20
    k4, k5, k6 = jax.random.split(jax.random.PRNGKey(1), 3)
    after2 = jax.random.normal(k4, (B2, Lmax2, odim2), jnp.bfloat16)
    before2 = jax.random.normal(k5, (B2, Lmax2, odim2), jnp.bfloat16)
    ys2 = jax.random.normal(k6, (B2, Lmax2, odim2), jnp.bfloat16)
    olens2 = jnp.array([24, 17, 3, 24, 9, 0, 13, 21, 24, 5, 18, 7], jnp.int32)

    l1b, mseb = tacotron2_loss(after2, before2, ys2, olens2,
                               block_rows=8, block_cols=128, num_shards=2)
    jax.block_until_ready((l1b, mseb))
    l1b_ref, mseb_ref = _reference(after2, before2, ys2, olens2)
    assert jnp.allclose(l1b, l1b_ref, rtol=1e-4, atol=1e-4), (l1b, l1b_ref)
    assert jnp.allclose(mseb, mseb_ref, rtol=1e-4, atol=1e-4), (mseb, mseb_ref)

    # --- Test 3: exercises the unmasked fast path (fully valid block), the
    #             scalar-prefetch column-skip (short block), and the zero-DMA
    #             duplicated tail batch block (nb=3 over 2 shards) -------------
    B3, Lmax3, odim3 = 24, 32, 16
    k7, k8, k9 = jax.random.split(jax.random.PRNGKey(2), 3)
    after3 = jax.random.normal(k7, (B3, Lmax3, odim3), jnp.float32)
    before3 = jax.random.normal(k8, (B3, Lmax3, odim3), jnp.float32)
    ys3 = jax.random.normal(k9, (B3, Lmax3, odim3), jnp.float32)
    olens3 = jnp.array([32] * 8 +
                       [20, 32, 5, 31, 0, 16, 32, 8] +
                       [12, 7, 3, 9, 1, 0, 11, 6], jnp.int32)

    l1c, msec = tacotron2_loss(after3, before3, ys3, olens3,
                               block_rows=8, block_cols=128, num_shards=2)
    jax.block_until_ready((l1c, msec))
    l1c_ref, msec_ref = _reference(after3, before3, ys3, olens3)
    assert jnp.allclose(l1c, l1c_ref, rtol=1e-5, atol=1e-5), (l1c, l1c_ref)
    assert jnp.allclose(msec, msec_ref, rtol=1e-5, atol=1e-5), (msec, msec_ref)

    print("KERNEL_OK")
</pallas_src>

<mosaic_0001>
module attributes {stable_mosaic.version = 11 : i64} {
  func.func @kernel(%arg0: i32, %arg1: i32, %arg2: i32, %arg3: memref<1xi32, #tpu.memory_space<smem>>, %arg4: memref<1xi32, #tpu.memory_space<smem>>, %arg5: memref<2x1xi32, #tpu.memory_space<vmem>>, %arg6: memref<2x128xf32, #tpu.memory_space<vmem>>, %arg7: memref<2x128xf32, #tpu.memory_space<vmem>>, %arg8: memref<2x128xf32, #tpu.memory_space<vmem>>, %arg9: memref<1x1x128xf32, #tpu.memory_space<vmem>>, %arg10: memref<2x128xf32, #tpu.memory_space<vmem>>, %arg11: memref<2x128xf32, #tpu.memory_space<vmem>>) attributes {dimension_semantics = [#tpu.dimension_semantics<parallel>, #tpu.dimension_semantics<arbitrary>, #tpu.dimension_semantics<arbitrary>], iteration_bounds = array<i64: 1, 1, 1>, scalar_prefetch = 2 : i64, scratch_operands = 2 : i64, tpu.core_type = #tpu.core_type<tc>, window_params = [{transform_indices = @transform_0, window_bounds = array<i64: 2, 1>}, {transform_indices = @transform_1, window_bounds = array<i64: 2, 128>}, {transform_indices = @transform_2, window_bounds = array<i64: 2, 128>}, {transform_indices = @transform_3, window_bounds = array<i64: 2, 128>}, {transform_indices = @transform_4, window_bounds = array<i64: 1, 1, 128>}]} {
    %c1_i32 = arith.constant 1 : i32
    %0 = arith.muli %arg0, %c1_i32 : i32
    %1 = arith.addi %0, %arg1 : i32
    %c0_i32 = arith.constant 0 : i32
    %2 = arith.minsi %1, %c0_i32 : i32
    %c1_i32_0 = arith.constant 1 : i32
    %3 = arith.cmpi slt, %1, %c1_i32_0 : i32
    %4 = arith.index_cast %2 : i32 to index
    %5 = memref.load %arg3[%4] : memref<1xi32, #tpu.memory_space<smem>>
    %6 = arith.index_cast %2 : i32 to index
    %7 = memref.load %arg4[%6] : memref<1xi32, #tpu.memory_space<smem>>
    %c0_i32_1 = arith.constant 0 : i32
    %8 = arith.cmpi eq, %arg1, %c0_i32_1 : i32
    %c0_i32_2 = arith.constant 0 : i32
    %9 = arith.cmpi eq, %arg2, %c0_i32_2 : i32
    %10 = arith.andi %8, %9 : i1
    %11 = arith.extui %10 : i1 to i32
    %c0_i32_3 = arith.constant 0 : i32
    %12 = arith.cmpi ne, %11, %c0_i32_3 : i32
    scf.if %12 {
      %cst = arith.constant 0.000000e+00 : f32
      %28 = vector.broadcast %cst : f32 to vector<2x128xf32>
      %c0 = arith.constant 0 : index
      %c0_9 = arith.constant 0 : index
      %29 = vector.load %arg10[%c0, %c0_9] : memref<2x128xf32, #tpu.memory_space<vmem>>, vector<2x128xf32>
      tpu.vector_store %arg10[%c0, %c0_9], %28 {strides = array<i32>} : memref<2x128xf32, #tpu.memory_space<vmem>>, vector<2x128xf32>,
      %cst_10 = arith.constant 0.000000e+00 : f32
      %30 = vector.broadcast %cst_10 : f32 to vector<2x128xf32>
      %c0_11 = arith.constant 0 : index
      %c0_12 = arith.constant 0 : index
      %31 = vector.load %arg11[%c0_11, %c0_12] : memref<2x128xf32, #tpu.memory_space<vmem>>, vector<2x128xf32>
      tpu.vector_store %arg11[%c0_11, %c0_12], %30 {strides = array<i32>} : memref<2x128xf32, #tpu.memory_space<vmem>>, vector<2x128xf32>,
    } else {
    }
    %13 = arith.cmpi slt, %arg2, %7 : i32
    %14 = arith.andi %3, %13 : i1
    %15 = arith.extui %14 : i1 to i32
    %c0_i32_4 = arith.constant 0 : i32
    %16 = arith.cmpi ne, %15, %c0_i32_4 : i32
    scf.if %16 {
      %c0 = arith.constant 0 : index
      %c0_9 = arith.constant 0 : index
      %28 = vector.load %arg6[%c0, %c0_9] : memref<2x128xf32, #tpu.memory_space<vmem>>, vector<2x128xf32>
      %c0_10 = arith.constant 0 : index
      %c0_11 = arith.constant 0 : index
      %29 = vector.load %arg7[%c0_10, %c0_11] : memref<2x128xf32, #tpu.memory_space<vmem>>, vector<2x128xf32>
      %c0_12 = arith.constant 0 : index
      %c0_13 = arith.constant 0 : index
      %30 = vector.load %arg8[%c0_12, %c0_13] : memref<2x128xf32, #tpu.memory_space<vmem>>, vector<2x128xf32>
      %31 = arith.subf %28, %30 : vector<2x128xf32>
      %32 = arith.subf %29, %30 : vector<2x128xf32>
      %c0_14 = arith.constant 0 : index
      %c0_15 = arith.constant 0 : index
      %33 = vector.load %arg10[%c0_14, %c0_15] : memref<2x128xf32, #tpu.memory_space<vmem>>, vector<2x128xf32>
      %34 = math.absf %31 : vector<2x128xf32>
      %35 = math.absf %32 : vector<2x128xf32>
      %36 = arith.addf %34, %35 : vector<2x128xf32>
      %37 = arith.addf %33, %36 : vector<2x128xf32>
      %c0_16 = arith.constant 0 : index
      %c0_17 = arith.constant 0 : index
      %38 = vector.load %arg10[%c0_16, %c0_17] : memref<2x128xf32, #tpu.memory_space<vmem>>, vector<2x128xf32>
      tpu.vector_store %arg10[%c0_16, %c0_17], %37 {strides = array<i32>} : memref<2x128xf32, #tpu.memory_space<vmem>>, vector<2x128xf32>,
      %c0_18 = arith.constant 0 : index
      %c0_19 = arith.constant 0 : index
      %39 = vector.load %arg11[%c0_18, %c0_19] : memref<2x128xf32, #tpu.memory_space<vmem>>, vector<2x128xf32>
      %40 = arith.mulf %31, %31 : vector<2x128xf32>
      %41 = arith.mulf %32, %32 : vector<2x128xf32>
      %42 = arith.addf %40, %41 : vector<2x128xf32>
      %43 = arith.addf %39, %42 : vector<2x128xf32>
      %c0_20 = arith.constant 0 : index
      %c0_21 = arith.constant 0 : index
      %44 = vector.load %arg11[%c0_20, %c0_21] : memref<2x128xf32, #tpu.memory_space<vmem>>, vector<2x128xf32>
      tpu.vector_store %arg11[%c0_20, %c0_21], %43 {strides = array<i32>} : memref<2x128xf32, #tpu.memory_space<vmem>>, vector<2x128xf32>,
    } else {
    }
    %17 = arith.cmpi sge, %arg2, %7 : i32
    %18 = arith.cmpi slt, %arg2, %5 : i32
    %19 = arith.andi %17, %18 : i1
    %20 = arith.andi %3, %19 : i1
    %21 = arith.extui %20 : i1 to i32
    %c0_i32_5 = arith.constant 0 : i32
    %22 = arith.cmpi ne, %21, %c0_i32_5 : i32
    scf.if %22 {
      %c0 = arith.constant 0 : index
      %c0_9 = arith.constant 0 : index
      %28 = vector.load %arg5[%c0, %c0_9] : memref<2x1xi32, #tpu.memory_space<vmem>>, vector<2x1xi32>
      %29 = tpu.iota {dimensions = array<i32: 1>} : vector<2x128xi32>
      %c128_i32 = arith.constant 128 : i32
      %30 = arith.muli %arg2, %c128_i32 : i32
      %31 = vector.broadcast %30 : i32 to vector<2x128xi32>
      %32 = arith.addi %29, %31 : vector<2x128xi32>
      %33 = vector.broadcast %28 : vector<2x1xi32> to vector<2x128xi32>
      %34 = arith.cmpi slt, %32, %33 : vector<2x128xi32>
      %c0_10 = arith.constant 0 : index
      %c0_11 = arith.constant 0 : index
      %35 = vector.load %arg6[%c0_10, %c0_11] : memref<2x128xf32, #tpu.memory_space<vmem>>, vector<2x128xf32>
      %c0_12 = arith.constant 0 : index
      %c0_13 = arith.constant 0 : index
      %36 = vector.load %arg7[%c0_12, %c0_13] : memref<2x128xf32, #tpu.memory_space<vmem>>, vector<2x128xf32>
      %c0_14 = arith.constant 0 : index
      %c0_15 = arith.constant 0 : index
      %37 = vector.load %arg8[%c0_14, %c0_15] : memref<2x128xf32, #tpu.memory_space<vmem>>, vector<2x128xf32>
      %38 = arith.subf %35, %37 : vector<2x128xf32>
      %cst = arith.constant 0.000000e+00 : f32
      %39 = vector.broadcast %cst : f32 to vector<2x128xf32>
      %40 = arith.select %34, %38, %39 : vector<2x128xi1>, vector<2x128xf32>
      %41 = arith.subf %36, %37 : vector<2x128xf32>
      %cst_16 = arith.constant 0.000000e+00 : f32
      %42 = vector.broadcast %cst_16 : f32 to vector<2x128xf32>
      %43 = arith.select %34, %41, %42 : vector<2x128xi1>, vector<2x128xf32>
      %c0_17 = arith.constant 0 : index
      %c0_18 = arith.constant 0 : index
      %44 = vector.load %arg10[%c0_17, %c0_18] : memref<2x128xf32, #tpu.memory_space<vmem>>, vector<2x128xf32>
      %45 = math.absf %40 : vector<2x128xf32>
      %46 = math.absf %43 : vector<2x128xf32>
      %47 = arith.addf %45, %46 : vector<2x128xf32>
      %48 = arith.addf %44, %47 : vector<2x128xf32>
      %c0_19 = arith.constant 0 : index
      %c0_20 = arith.constant 0 : index
      %49 = vector.load %arg10[%c0_19, %c0_20] : memref<2x128xf32, #tpu.memory_space<vmem>>, vector<2x128xf32>
      tpu.vector_store %arg10[%c0_19, %c0_20], %48 {strides = array<i32>} : memref<2x128xf32, #tpu.memory_space<vmem>>, vector<2x128xf32>,
      %c0_21 = arith.constant 0 : index
      %c0_22 = arith.constant 0 : index
      %50 = vector.load %arg11[%c0_21, %c0_22] : memref<2x128xf32, #tpu.memory_space<vmem>>, vector<2x128xf32>
      %51 = arith.mulf %40, %40 : vector<2x128xf32>
      %52 = arith.mulf %43, %43 : vector<2x128xf32>
      %53 = arith.addf %51, %52 : vector<2x128xf32>
      %54 = arith.addf %50, %53 : vector<2x128xf32>
      %c0_23 = arith.constant 0 : index
      %c0_24 = arith.constant 0 : index
      %55 = vector.load %arg11[%c0_23, %c0_24] : memref<2x128xf32, #tpu.memory_space<vmem>>, vector<2x128xf32>
      tpu.vector_store %arg11[%c0_23, %c0_24], %54 {strides = array<i32>} : memref<2x128xf32, #tpu.memory_space<vmem>>, vector<2x128xf32>,
    } else {
    }
    %c0_i32_6 = arith.constant 0 : i32
    %23 = arith.cmpi eq, %arg1, %c0_i32_6 : i32
    %c0_i32_7 = arith.constant 0 : i32
    %24 = arith.cmpi eq, %arg2, %c0_i32_7 : i32
    %25 = arith.andi %23, %24 : i1
    %26 = arith.extui %25 : i1 to i32
    %c0_i32_8 = arith.constant 0 : i32
    %27 = arith.cmpi ne, %26, %c0_i32_8 : i32
    scf.if %27 {
      %c0 = arith.constant 0 : index
      %c0_9 = arith.constant 0 : index
      %28 = vector.load %arg10[%c0, %c0_9] : memref<2x128xf32, #tpu.memory_space<vmem>>, vector<2x128xf32>
      %29 = vector.shape_cast %28 : vector<2x128xf32> to vector<1x2x128xf32>
      %cst = arith.constant dense<0.000000e+00> : vector<1xf32>
      %30 = vector.multi_reduction <add>, %29, %cst [1, 2] : vector<1x2x128xf32> to vector<1xf32>
      %31 = vector.shape_cast %30 : vector<1xf32> to vector<1x1x1xf32>
      %32 = vector.extract %31[0, 0, 0] : f32 from vector<1x1x1xf32>
      %c0_10 = arith.constant 0 : index
      %c0_11 = arith.constant 0 : index
      %33 = vector.load %arg11[%c0_10, %c0_11] : memref<2x128xf32, #tpu.memory_space<vmem>>, vector<2x128xf32>
      %34 = vector.shape_cast %33 : vector<2x128xf32> to vector<1x2x128xf32>
      %cst_12 = arith.constant dense<0.000000e+00> : vector<1xf32>
      %35 = vector.multi_reduction <add>, %34, %cst_12 [1, 2] : vector<1x2x128xf32> to vector<1xf32>
      %36 = vector.shape_cast %35 : vector<1xf32> to vector<1x1x1xf32>
      %37 = vector.extract %36[0, 0, 0] : f32 from vector<1x1x1xf32>
      %38 = tpu.iota {dimensions = array<i32: 2>} : vector<1x1x128xi32>
      %c0_i32_13 = arith.constant 0 : i32
      %39 = vector.broadcast %c0_i32_13 : i32 to vector<1x1x128xi32>
      %40 = arith.cmpi eq, %38, %39 : vector<1x1x128xi32>
      %c1_i32_14 = arith.constant 1 : i32
      %41 = vector.broadcast %c1_i32_14 : i32 to vector<1x1x128xi32>
      %42 = arith.cmpi eq, %38, %41 : vector<1x1x128xi32>
      %cst_15 = arith.constant 0.000000e+00 : f32
      %43 = vector.broadcast %37 : f32 to vector<1x1x128xf32>
      %44 = vector.broadcast %cst_15 : f32 to vector<1x1x128xf32>
      %45 = arith.select %42, %43, %44 : vector<1x1x128xi1>, vector<1x1x128xf32>
      %46 = vector.broadcast %32 : f32 to vector<1x1x128xf32>
      %47 = arith.select %40, %46, %45 : vector<1x1x128xi1>, vector<1x1x128xf32>
      %c0_16 = arith.constant 0 : index
      %c0_17 = arith.constant 0 : index
      %c0_18 = arith.constant 0 : index
      %48 = vector.load %arg9[%c0_16, %c0_17, %c0_18] : memref<1x1x128xf32, #tpu.memory_space<vmem>>, vector<1x1x128xf32>
      tpu.vector_store %arg9[%c0_16, %c0_17, %c0_18], %47 {strides = array<i32>} : memref<1x1x128xf32, #tpu.memory_space<vmem>>, vector<1x1x128xf32>,
    } else {
    }
    return
  }
  func.func @transform_0(%arg0: i32, %arg1: i32, %arg2: i32, %arg3: memref<1xi32, #tpu.memory_space<smem>>, %arg4: memref<1xi32, #tpu.memory_space<smem>>) -> (i32, i32) {
    %c1_i32 = arith.constant 1 : i32
    %0 = arith.muli %arg0, %c1_i32 : i32
    %1 = arith.addi %0, %arg1 : i32
    %c0_i32 = arith.constant 0 : i32
    %2 = arith.minsi %1, %c0_i32 : i32
    %c0_i32_0 = arith.constant 0 : i32
    %c0_i32_1 = arith.constant 0 : i32
    return %2, %c0_i32_0 : i32, i32
  }
  func.func @transform_1(%arg0: i32, %arg1: i32, %arg2: i32, %arg3: memref<1xi32, #tpu.memory_space<smem>>, %arg4: memref<1xi32, #tpu.memory_space<smem>>) -> (i32, i32) {
    %c1_i32 = arith.constant 1 : i32
    %0 = arith.muli %arg0, %c1_i32 : i32
    %1 = arith.addi %0, %arg1 : i32
    %c0_i32 = arith.constant 0 : i32
    %2 = arith.minsi %1, %c0_i32 : i32
    %3 = arith.index_cast %2 : i32 to index
    %4 = memref.load %arg3[%3] : memref<1xi32, #tpu.memory_space<smem>>
    %c1_i32_0 = arith.constant 1 : i32
    %5 = arith.subi %4, %c1_i32_0 : i32
    %c0_i32_1 = arith.constant 0 : i32
    %6 = arith.maxsi %5, %c0_i32_1 : i32
    %c1_i32_2 = arith.constant 1 : i32
    %7 = arith.cmpi slt, %1, %c1_i32_2 : i32
    %8 = arith.minsi %arg2, %6 : i32
    %9 = arith.select %7, %8, %6 : i32
    %c0_i32_3 = arith.constant 0 : i32
    return %2, %9 : i32, i32
  }
  func.func @transform_2(%arg0: i32, %arg1: i32, %arg2: i32, %arg3: memref<1xi32, #tpu.memory_space<smem>>, %arg4: memref<1xi32, #tpu.memory_space<smem>>) -> (i32, i32) {
    %c1_i32 = arith.constant 1 : i32
    %0 = arith.muli %arg0, %c1_i32 : i32
    %1 = arith.addi %0, %arg1 : i32
    %c0_i32 = arith.constant 0 : i32
    %2 = arith.minsi %1, %c0_i32 : i32
    %3 = arith.index_cast %2 : i32 to index
    %4 = memref.load %arg3[%3] : memref<1xi32, #tpu.memory_space<smem>>
    %c1_i32_0 = arith.constant 1 : i32
    %5 = arith.subi %4, %c1_i32_0 : i32
    %c0_i32_1 = arith.constant 0 : i32
    %6 = arith.maxsi %5, %c0_i32_1 : i32
    %c1_i32_2 = arith.constant 1 : i32
    %7 = arith.cmpi slt, %1, %c1_i32_2 : i32
    %8 = arith.minsi %arg2, %6 : i32
    %9 = arith.select %7, %8, %6 : i32
    %c0_i32_3 = arith.constant 0 : i32
    return %2, %9 : i32, i32
  }
  func.func @transform_3(%arg0: i32, %arg1: i32, %arg2: i32, %arg3: memref<1xi32, #tpu.memory_space<smem>>, %arg4: memref<1xi32, #tpu.memory_space<smem>>) -> (i32, i32) {
    %c1_i32 = arith.constant 1 : i32
    %0 = arith.muli %arg0, %c1_i32 : i32
    %1 = arith.addi %0, %arg1 : i32
    %c0_i32 = arith.constant 0 : i32
    %2 = arith.minsi %1, %c0_i32 : i32
    %3 = arith.index_cast %2 : i32 to index
    %4 = memref.load %arg3[%3] : memref<1xi32, #tpu.memory_space<smem>>
    %c1_i32_0 = arith.constant 1 : i32
    %5 = arith.subi %4, %c1_i32_0 : i32
    %c0_i32_1 = arith.constant 0 : i32
    %6 = arith.maxsi %5, %c0_i32_1 : i32
    %c1_i32_2 = arith.constant 1 : i32
    %7 = arith.cmpi slt, %1, %c1_i32_2 : i32
    %8 = arith.minsi %arg2, %6 : i32
    %9 = arith.select %7, %8, %6 : i32
    %c0_i32_3 = arith.constant 0 : i32
    return %2, %9 : i32, i32
  }
  func.func @transform_4(%arg0: i32, %arg1: i32, %arg2: i32, %arg3: memref<1xi32, #tpu.memory_space<smem>>, %arg4: memref<1xi32, #tpu.memory_space<smem>>) -> (i32, i32, i32) {
    %c0_i32 = arith.constant 0 : i32
    %c0_i32_0 = arith.constant 0 : i32
    %c0_i32_1 = arith.constant 0 : i32
    return %arg0, %c0_i32, %c0_i32_0 : i32, i32, i32
  }
}

</mosaic_0001>

<llo_original>
// kernel: tpu_custom_call.1
$region0: #{tpu_custom_call.1}
  #allocation0 [shape = 'u32[]', space=smem, size = 0x4, offset = 0x4, fixed_abs, tag = 'smem constant byte address 0x4 - core index']
  #allocation1 [shape = 'u32[144,128]{1,0:T(1,128)}', space=vmem, size = 0x12000, scoped, tag = 'internal scratch']
  #allocation2 [shape = 'f32[2,128]{1,0:T(2,128)}', space=vmem, size = 0x400, scoped, tag = 'scratch operand']
  #allocation3 [shape = 'f32[2,128]{1,0:T(2,128)}', space=vmem, size = 0x400, scoped, tag = 'scratch operand']
  #allocation4 [shape = 's32[1]{0}', space=sflag, size = 0x4, scoped, tag = 'scoped memory for tpu_custom_call.1']
  #allocation5 [shape = 's32[1]{0:T(128)S(6)}', space=smem, size = 0x200, scoped, tag = 'prefetched SMEM operand 0']
  #allocation6 [shape = 's32[1]{0:T(128)S(6)}', space=smem, size = 0x200, scoped, tag = 'prefetched SMEM operand 1']
  %s0 = inlined_call_operand.<no memory space> [shape: s32[1], index: 0, kind: input, shape index: {}]
  %s1 = inlined_call_operand.<no memory space> [shape: s32[1], index: 1, kind: input, shape index: {}]
  %s2 = inlined_call_operand.vmem [shape: s32[2,1], index: 2, kind: input, shape index: {}]
  %s3 = inlined_call_operand.vmem [shape: f32[2,128], index: 3, kind: input, shape index: {}]
  %s4 = inlined_call_operand.vmem [shape: f32[2,128], index: 4, kind: input, shape index: {}]
  %s5 = inlined_call_operand.vmem [shape: f32[2,128], index: 5, kind: input, shape index: {}]
  %s6 = inlined_call_operand.hbm [shape: f32[1,1,128], index: 6, kind: output, shape index: {}]
  %s7 = sld [smem:[#allocation0]]
  $region42: #{tpu_custom_call.1} parent=0
    _
  %s9 = ssub.s32 1, %s7
  %s10 = scalar_select 0, %s9, %s7
  %11 = sst [smem:[#allocation5]] %s0
  %12 = sst [smem:[#allocation6]] %s1
  $region1: #{tpu_custom_call.1} parent=0
    #allocation7 [shape = 'u8[512]{0}', space=vmem, size = 0x400, scoped, tag = 'output window, operand 0, single buffered']
    #allocation8 [shape = 's32[1]{0}', space=sflag, size = 0x4, scoped, tag = 'scoped memory for tpu_custom_call.1']
    %13 = vsyncpa [#allocation8], 0
    // Predicated region
    $region2: #{tpu_custom_call.1} parent=1 // pred_check
      _
    $region3: #{tpu_custom_call.1} parent=1 // pred_check_branch
      %15 = sbr.rel (0) target = $region5
    $region4: #{tpu_custom_call.1} parent=1 // pred_region
      %s16 = sadd.s32 0, 0
      %p17 = scmp.lt.s32.totalorder %s16, 0
      %s18 = scalar_select %p17, %s16, 0
      %p19 = scmp.lt.s32.totalorder %s18, 0
      %s20 = scalar_select %p19, %s18, 0
      %s21 = smul.addr %s20, 2
      %s22 = scalar_lea.vmem %s2, %s21
      %s23 = sadd.s32 0, 0
      %p24 = scmp.lt.s32.totalorder %s23, 0
      %s25 = scalar_select %p24, %s23, 0
    $region5: #{tpu_custom_call.1} parent=1 // pred_fallthru
      _
    // Predicated region
    $region6: #{tpu_custom_call.1} parent=1 // pred_check
      _
    $region7: #{tpu_custom_call.1} parent=1 // pred_check_branch
      %27 = sbr.rel (0) target = $region9
    $region8: #{tpu_custom_call.1} parent=1 // pred_region
      %s28 = sadd.s32 0, 0
      %p29 = scmp.lt.s32.totalorder %s28, 0
      %s30 = scalar_select %p29, %s28, 0
      %s31 = sld [smem:[#allocation5 + %s30]]
      %s32 = ssub.s32 %s31, 1
      %p33 = scmp.gt.s32.totalorder %s32, 0
      %s34 = scalar_select %p33, %s32, 0
      %p35 = scmp.lt.s32.totalorder %s28, 1
      %p36 = scmp.lt.s32.totalorder 0, %s34
      %s37 = scalar_select %p36, 0, %s34
      %s38 = scalar_select %p35, %s37, %s34
      %p39 = scmp.lt.s32.totalorder %s30, 0
      %s40 = scalar_select %p39, %s30, 0
      %p41 = scmp.lt.s32.totalorder %s38, 0
      %s42 = scalar_select %p41, %s38, 0
      %s43 = sadd.s32 %s42, %s40
      %s44 = smul.addr %s43, 2
      %s45 = scalar_lea.vmem %s3, %s44
      %s46 = sadd.s32 0, 0
      %p47 = scmp.lt.s32.totalorder %s46, 0
      %s48 = scalar_select %p47, %s46, 0
      %s49 = sld [smem:[#allocation5 + %s48]]
      %s50 = ssub.s32 %s49, 1
      %p51 = scmp.gt.s32.totalorder %s50, 0
      %s52 = scalar_select %p51, %s50, 0
      %p53 = scmp.lt.s32.totalorder %s46, 1
      %p54 = scmp.lt.s32.totalorder 0, %s52
      %s55 = scalar_select %p54, 0, %s52
      %s56 = scalar_select %p53, %s55, %s52
    $region9: #{tpu_custom_call.1} parent=1 // pred_fallthru
      _
    // Predicated region
    $region10: #{tpu_custom_call.1} parent=1 // pred_check
      _
    $region11: #{tpu_custom_call.1} parent=1 // pred_check_branch
      %58 = sbr.rel (0) target = $region13
    $region12: #{tpu_custom_call.1} parent=1 // pred_region
      %s59 = sadd.s32 0, 0
      %p60 = scmp.lt.s32.totalorder %s59, 0
      %s61 = scalar_select %p60, %s59, 0
      %s62 = sld [smem:[#allocation5 + %s61]]
      %s63 = ssub.s32 %s62, 1
      %p64 = scmp.gt.s32.totalorder %s63, 0
      %s65 = scalar_select %p64, %s63, 0
      %p66 = scmp.lt.s32.totalorder %s59, 1
      %p67 = scmp.lt.s32.totalorder 0, %s65
      %s68 = scalar_select %p67, 0, %s65
      %s69 = scalar_select %p66, %s68, %s65
      %p70 = scmp.lt.s32.totalorder %s61, 0
      %s71 = scalar_select %p70, %s61, 0
      %p72 = scmp.lt.s32.totalorder %s69, 0
      %s73 = scalar_select %p72, %s69, 0
      %s74 = sadd.s32 %s73, %s71
      %s75 = smul.addr %s74, 2
      %s76 = scalar_lea.vmem %s4, %s75
      %s77 = sadd.s32 0, 0
      %p78 = scmp.lt.s32.totalorder %s77, 0
      %s79 = scalar_select %p78, %s77, 0
      %s80 = sld [smem:[#allocation5 + %s79]]
      %s81 = ssub.s32 %s80, 1
      %p82 = scmp.gt.s32.totalorder %s81, 0
      %s83 = scalar_select %p82, %s81, 0
      %p84 = scmp.lt.s32.totalorder %s77, 1
      %p85 = scmp.lt.s32.totalorder 0, %s83
      %s86 = scalar_select %p85, 0, %s83
      %s87 = scalar_select %p84, %s86, %s83
    $region13: #{tpu_custom_call.1} parent=1 // pred_fallthru
      _
    // Predicated region
    $region14: #{tpu_custom_call.1} parent=1 // pred_check
      _
    $region15: #{tpu_custom_call.1} parent=1 // pred_check_branch
      %89 = sbr.rel (0) target = $region17
    $region16: #{tpu_custom_call.1} parent=1 // pred_region
      %s90 = sadd.s32 0, 0
      %p91 = scmp.lt.s32.totalorder %s90, 0
      %s92 = scalar_select %p91, %s90, 0
      %s93 = sld [smem:[#allocation5 + %s92]]
      %s94 = ssub.s32 %s93, 1
      %p95 = scmp.gt.s32.totalorder %s94, 0
      %s96 = scalar_select %p95, %s94, 0
      %p97 = scmp.lt.s32.totalorder %s90, 1
      %p98 = scmp.lt.s32.totalorder 0, %s96
      %s99 = scalar_select %p98, 0, %s96
      %s100 = scalar_select %p97, %s99, %s96
      %p101 = scmp.lt.s32.totalorder %s92, 0
      %s102 = scalar_select %p101, %s92, 0
      %p103 = scmp.lt.s32.totalorder %s100, 0
      %s104 = scalar_select %p103, %s100, 0
      %s105 = sadd.s32 %s104, %s102
      %s106 = smul.addr %s105, 2
      %s107 = scalar_lea.vmem %s5, %s106
      %s108 = sadd.s32 0, 0
      %p109 = scmp.lt.s32.totalorder %s108, 0
      %s110 = scalar_select %p109, %s108, 0
      %s111 = sld [smem:[#allocation5 + %s110]]
      %s112 = ssub.s32 %s111, 1
      %p113 = scmp.gt.s32.totalorder %s112, 0
      %s114 = scalar_select %p113, %s112, 0
      %p115 = scmp.lt.s32.totalorder %s108, 1
      %p116 = scmp.lt.s32.totalorder 0, %s114
      %s117 = scalar_select %p116, 0, %s114
      %s118 = scalar_select %p115, %s117, %s114
    $region17: #{tpu_custom_call.1} parent=1 // pred_fallthru
      _
    %s119 = sadd.s32 0, 0
    %p120 = scmp.lt.s32.totalorder %s119, 0
    %s121 = scalar_select %p120, %s119, 0
    %p122 = scmp.lt.s32.totalorder %s121, 0
    %s123 = scalar_select %p122, %s121, 0
    %s124 = smul.addr %s123, 2
    %s125 = scalar_lea.vmem %s2, %s124
    %s126 = sadd.s32 0, 0
    %p127 = scmp.lt.s32.totalorder %s126, 0
    %s128 = scalar_select %p127, %s126, 0
    %s129 = sld [smem:[#allocation5 + %s128]]
    %s130 = ssub.s32 %s129, 1
    %p131 = scmp.gt.s32.totalorder %s130, 0
    %s132 = scalar_select %p131, %s130, 0
    %p133 = scmp.lt.s32.totalorder %s126, 1
    %p134 = scmp.lt.s32.totalorder 0, %s132
    %s135 = scalar_select %p134, 0, %s132
    %s136 = scalar_select %p133, %s135, %s132
    %p137 = scmp.lt.s32.totalorder %s128, 0
    %s138 = scalar_select %p137, %s128, 0
    %p139 = scmp.lt.s32.totalorder %s136, 0
    %s140 = scalar_select %p139, %s136, 0
    %s141 = sadd.s32 %s140, %s138
    %s142 = smul.addr %s141, 2
    %s143 = scalar_lea.vmem %s3, %s142
    %s144 = sadd.s32 0, 0
    %p145 = scmp.lt.s32.totalorder %s144, 0
    %s146 = scalar_select %p145, %s144, 0
    %s147 = sld [smem:[#allocation5 + %s146]]
    %s148 = ssub.s32 %s147, 1
    %p149 = scmp.gt.s32.totalorder %s148, 0
    %s150 = scalar_select %p149, %s148, 0
    %p151 = scmp.lt.s32.totalorder %s144, 1
    %p152 = scmp.lt.s32.totalorder 0, %s150
    %s153 = scalar_select %p152, 0, %s150
    %s154 = scalar_select %p151, %s153, %s150
    %p155 = scmp.lt.s32.totalorder %s146, 0
    %s156 = scalar_select %p155, %s146, 0
    %p157 = scmp.lt.s32.totalorder %s154, 0
    %s158 = scalar_select %p157, %s154, 0
    %s159 = sadd.s32 %s158, %s156
    %s160 = smul.addr %s159, 2
    %s161 = scalar_lea.vmem %s4, %s160
    %s162 = sadd.s32 0, 0
    %p163 = scmp.lt.s32.totalorder %s162, 0
    %s164 = scalar_select %p163, %s162, 0
    %s165 = sld [smem:[#allocation5 + %s164]]
    %s166 = ssub.s32 %s165, 1
    %p167 = scmp.gt.s32.totalorder %s166, 0
    %s168 = scalar_select %p167, %s166, 0
    %p169 = scmp.lt.s32.totalorder %s162, 1
    %p170 = scmp.lt.s32.totalorder 0, %s168
    %s171 = scalar_select %p170, 0, %s168
    %s172 = scalar_select %p169, %s171, %s168
    %p173 = scmp.lt.s32.totalorder %s164, 0
    %s174 = scalar_select %p173, %s164, 0
    %p175 = scmp.lt.s32.totalorder %s172, 0
    %s176 = scalar_select %p175, %s172, 0
    %s177 = sadd.s32 %s176, %s174
    %s178 = smul.addr %s177, 2
    %s179 = scalar_lea.vmem %s5, %s178
    %s180 = sadd.s32 0, 0
    %p181 = scmp.lt.s32.totalorder %s180, 0
    %s182 = scalar_select %p181, %s180, 0
    %p183 = scmp.lt.s32.totalorder %s182, 0
    %s184 = scalar_select %p183, %s182, 0
    %s185 = smul.addr %s184, 2
    %s186 = scalar_lea.vmem %s2, %s185
    %s187 = sadd.s32 0, 0
    %p188 = scmp.lt.s32.totalorder %s187, 0
    %s189 = scalar_select %p188, %s187, 0
    %s190 = sadd.s32 0, 0
    %p191 = scmp.lt.s32.totalorder %s190, 0
    %s192 = scalar_select %p191, %s190, 0
    %s193 = sld [smem:[#allocation5 + %s192]]
    %s194 = ssub.s32 %s193, 1
    %p195 = scmp.gt.s32.totalorder %s194, 0
    %s196 = scalar_select %p195, %s194, 0
    %p197 = scmp.lt.s32.totalorder %s190, 1
    %p198 = scmp.lt.s32.totalorder 0, %s196
    %s199 = scalar_select %p198, 0, %s196
    %s200 = scalar_select %p197, %s199, %s196
    %p201 = scmp.lt.s32.totalorder %s192, 0
    %s202 = scalar_select %p201, %s192, 0
    %p203 = scmp.lt.s32.totalorder %s200, 0
    %s204 = scalar_select %p203, %s200, 0
    %s205 = sadd.s32 %s204, %s202
    %s206 = smul.addr %s205, 2
    %s207 = scalar_lea.vmem %s3, %s206
    %s208 = sadd.s32 0, 0
    %p209 = scmp.lt.s32.totalorder %s208, 0
    %s210 = scalar_select %p209, %s208, 0
    %s211 = sld [smem:[#allocation5 + %s210]]
    %s212 = ssub.s32 %s211, 1
    %p213 = scmp.gt.s32.totalorder %s212, 0
    %s214 = scalar_select %p213, %s212, 0
    %p215 = scmp.lt.s32.totalorder %s208, 1
    %p216 = scmp.lt.s32.totalorder 0, %s214
    %s217 = scalar_select %p216, 0, %s214
    %s218 = scalar_select %p215, %s217, %s214
    %s219 = sadd.s32 0, 0
    %p220 = scmp.lt.s32.totalorder %s219, 0
    %s221 = scalar_select %p220, %s219, 0
    %s222 = sld [smem:[#allocation5 + %s221]]
    %s223 = ssub.s32 %s222, 1
    %p224 = scmp.gt.s32.totalorder %s223, 0
    %s225 = scalar_select %p224, %s223, 0
    %p226 = scmp.lt.s32.totalorder %s219, 1
    %p227 = scmp.lt.s32.totalorder 0, %s225
    %s228 = scalar_select %p227, 0, %s225
    %s229 = scalar_select %p226, %s228, %s225
    %p230 = scmp.lt.s32.totalorder %s221, 0
    %s231 = scalar_select %p230, %s221, 0
    %p232 = scmp.lt.s32.totalorder %s229, 0
    %s233 = scalar_select %p232, %s229, 0
    %s234 = sadd.s32 %s233, %s231
    %s235 = smul.addr %s234, 2
    %s236 = scalar_lea.vmem %s4, %s235
    %s237 = sadd.s32 0, 0
    %p238 = scmp.lt.s32.totalorder %s237, 0
    %s239 = scalar_select %p238, %s237, 0
    %s240 = sld [smem:[#allocation5 + %s239]]
    %s241 = ssub.s32 %s240, 1
    %p242 = scmp.gt.s32.totalorder %s241, 0
    %s243 = scalar_select %p242, %s241, 0
    %p244 = scmp.lt.s32.totalorder %s237, 1
    %p245 = scmp.lt.s32.totalorder 0, %s243
    %s246 = scalar_select %p245, 0, %s243
    %s247 = scalar_select %p244, %s246, %s243
    %s248 = sadd.s32 0, 0
    %p249 = scmp.lt.s32.totalorder %s248, 0
    %s250 = scalar_select %p249, %s248, 0
    %s251 = sld [smem:[#allocation5 + %s250]]
    %s252 = ssub.s32 %s251, 1
    %p253 = scmp.gt.s32.totalorder %s252, 0
    %s254 = scalar_select %p253, %s252, 0
    %p255 = scmp.lt.s32.totalorder %s248, 1
    %p256 = scmp.lt.s32.totalorder 0, %s254
    %s257 = scalar_select %p256, 0, %s254
    %s258 = scalar_select %p255, %s257, %s254
    %p259 = scmp.lt.s32.totalorder %s250, 0
    %s260 = scalar_select %p259, %s250, 0
    %p261 = scmp.lt.s32.totalorder %s258, 0
    %s262 = scalar_select %p261, %s258, 0
    %s263 = sadd.s32 %s262, %s260
    %s264 = smul.addr %s263, 2
    %s265 = scalar_lea.vmem %s5, %s264
    %s266 = sadd.s32 0, 0
    %p267 = scmp.lt.s32.totalorder %s266, 0
    %s268 = scalar_select %p267, %s266, 0
    %s269 = sld [smem:[#allocation5 + %s268]]
    %s270 = ssub.s32 %s269, 1
    %p271 = scmp.gt.s32.totalorder %s270, 0
    %s272 = scalar_select %p271, %s270, 0
    %p273 = scmp.lt.s32.totalorder %s266, 1
    %p274 = scmp.lt.s32.totalorder 0, %s272
    %s275 = scalar_select %p274, 0, %s272
    %s276 = scalar_select %p273, %s275, %s272
    %s277 = sadd.s32 0, 0
    %p278 = scmp.lt.s32.totalorder %s277, 0
    %s279 = scalar_select %p278, %s277, 0
    %p280 = scmp.lt.s32.totalorder %s277, 1
    %s281 = sld [smem:[#allocation5 + %s279]]
    %s282 = sld [smem:[#allocation6 + %s279]]
    %p283 = scmp.eq.s32.totalorder 0, 0
    %p284 = scmp.eq.s32.totalorder 0, 0
    %p285 = pnand %p283, %p284
    %p286 = pneg %p285
    // Predicated region
    $region18: #{tpu_custom_call.1} parent=1 // pred_check
      _
    $region19: #{tpu_custom_call.1} parent=1 // pred_check_branch
      %288 = sbr.rel (%p285) target = $region21
    $region20: #{tpu_custom_call.1} parent=1 // pred_region
      %289 = vst [vmem:[#allocation2] sm:$0x3] 0.0
      %290 = vst [vmem:[#allocation3] sm:$0x3] 0.0
    $region21: #{tpu_custom_call.1} parent=1 // pred_fallthru
      _
    %p291 = scmp.lt.s32.totalorder 0, %s282
    %p292 = pnand %p280, %p291
    %p293 = pneg %p292
    // Predicated region
    $region22: #{tpu_custom_call.1} parent=1 // pred_check
      _
    $region23: #{tpu_custom_call.1} parent=1 // pred_check_branch
      %295 = sbr.rel (%p292) target = $region25
    $region24: #{tpu_custom_call.1} parent=1 // pred_region
      %v296 = vld [vmem:[%s207] sm:$0x3]
      %v297 = vld [vmem:[%s236] sm:$0x3]
      %v298 = vld [vmem:[%s265] sm:$0x3]
      %v299 = vsub.f32 %v296, %v298
      %v300 = vsub.f32 %v297, %v298
      %v301 = vld [vmem:[#allocation2] sm:$0x3]
      %v302 = vand.u32 2147483647, %v299
      %v303 = vand.u32 2147483647, %v300
      %v304 = vadd.f32 %v302, %v303
      %v305 = vadd.f32 %v301, %v304
      %306 = vst [vmem:[#allocation2] sm:$0x3] %v305
      %v307 = vld [vmem:[#allocation3] sm:$0x3]
      %v308 = vmul.f32 %v299, %v299
      %v309 = vmul.f32 %v300, %v300
      %v310 = vadd.f32 %v308, %v309
      %v311 = vadd.f32 %v307, %v310
      %312 = vst [vmem:[#allocation3] sm:$0x3] %v311
    $region25: #{tpu_custom_call.1} parent=1 // pred_fallthru
      _
    %p313 = scmp.ge.s32.totalorder 0, %s282
    %p314 = scmp.lt.s32.totalorder 0, %s281
    %p315 = pnand %p313, %p314
    %p316 = pneg %p315
    %p317 = pnand %p280, %p316
    %p318 = pneg %p317
    // Predicated region
    $region26: #{tpu_custom_call.1} parent=1 // pred_check
      _
    $region27: #{tpu_custom_call.1} parent=1 // pred_check_branch
      %320 = sbr.rel (%p317) target = $region29
    $region28: #{tpu_custom_call.1} parent=1 // pred_region
      %v321 = vld [vmem:[%s186] sm:$0x3]
      %v322 = vlaneseq
      %v323 = vand.u32 %v322, 127
      %s324 = smul.u32 0, 128
      %v325 = vstv %s324
      %v326 = vadd.s32 %v323, %v325
      %327 = vset.pattern.permute.xlu0 0
      %328 = vperm.xlu0 %327, %v321
      %v329 = vpop.permute.xlu0 %328
      %vm330 = vcmp.lt.s32.totalorder %v326, %v329
      %v331 = vld [vmem:[%s207] sm:$0x3]
      %v332 = vld [vmem:[%s236] sm:$0x3]
      %v333 = vld [vmem:[%s265] sm:$0x3]
      %v334 = vsub.f32 %v331, %v333
      %v335 = vsel %vm330, %v334, 0.0
      %v336 = vsub.f32 %v332, %v333
      %v337 = vsel %vm330, %v336, 0.0
      %v338 = vld [vmem:[#allocation2] sm:$0x3]
      %v339 = vand.u32 2147483647, %v335
      %v340 = vand.u32 2147483647, %v337
      %v341 = vadd.f32 %v339, %v340
      %v342 = vadd.f32 %v338, %v341
      %343 = vst [vmem:[#allocation2] sm:$0x3] %v342
      %v344 = vld [vmem:[#allocation3] sm:$0x3]
      %v345 = vmul.f32 %v335, %v335
      %v346 = vmul.f32 %v337, %v337
      %v347 = vadd.f32 %v345, %v346
      %v348 = vadd.f32 %v344, %v347
      %349 = vst [vmem:[#allocation3] sm:$0x3] %v348
    $region29: #{tpu_custom_call.1} parent=1 // pred_fallthru
      _
    // Predicated region
    $region30: #{tpu_custom_call.1} parent=1 // pred_check
      _
    $region31: #{tpu_custom_call.1} parent=1 // pred_check_branch
      %351 = sbr.rel (%p285) target = $region33
    $region32: #{tpu_custom_call.1} parent=1 // pred_region
      %v352 = vld [vmem:[#allocation2] sm:$0x3]
      %vm353 = vcmask 1041408
      %v354 = vsel %vm353, %v352, 0.0
      %355 = vadd.xlane.f32.xlu0 %v354
      %v356 = vpop.xlane.xlu0 %355
      %v357 = vrot.slane %v356, 4
      %v358 = vadd.f32 %v356, %v357
      %v359 = vrot.slane %v358, 2
      %v360 = vadd.f32 %v358, %v359
      %v361 = vrot.slane %v360, 1
      %v362 = vadd.f32 %v360, %v361
      %s363 = vtos %v362
      %v364 = vld [vmem:[#allocation3] sm:$0x3]
      %v365 = vsel %vm353, %v364, 0.0
      %366 = vadd.xlane.f32.xlu0 %v365
      %v367 = vpop.xlane.xlu0 %366
      %v368 = vrot.slane %v367, 4
      %v369 = vadd.f32 %v367, %v368
      %v370 = vrot.slane %v369, 2
      %v371 = vadd.f32 %v369, %v370
      %v372 = vrot.slane %v371, 1
      %v373 = vadd.f32 %v371, %v372
      %s374 = vtos %v373
      %v375 = vlaneseq
      %v376 = vand.u32 %v375, 127
      %vm377 = vcmp.eq.s32.totalorder %v376, 0
      %vm378 = vcmp.eq.s32.totalorder %v376, 1
      %v379 = vstv %s374
      %v380 = vsel %vm378, %v379, 0.0
      %v381 = vstv %s363
      %v382 = vsel %vm377, %v381, %v380
      %383 = vst [vmem:[#allocation7] sm:$0x1] %v382
    $region33: #{tpu_custom_call.1} parent=1 // pred_fallthru
      _
    // Predicated region
    $region34: #{tpu_custom_call.1} parent=1 // pred_check
      _
    $region35: #{tpu_custom_call.1} parent=1 // pred_check_branch
      %385 = sbr.rel (0) target = $region37
    $region36: #{tpu_custom_call.1} parent=1 // pred_region
      %s387 = ssub.s32 16, 16
      %388 = vsyncadd [#allocation8], %s387
      %s390 = sshll.u32 [#allocation7], 4
      %s391 = int_to_ptr.vmem [resolvable:$true] %s390
      %393 = dma.vmem_to_hbm [thread:$0]  %s391, 16, %s6, [#allocation8]
    $region37: #{tpu_custom_call.1} parent=1 // pred_fallthru
      _
    // Predicated region
    $region38: #{tpu_custom_call.1} parent=1 // pred_check
      _
    $region39: #{tpu_custom_call.1} parent=1 // pred_check_branch
      %395 = sbr.rel (0) target = $region41
    $region40: #{tpu_custom_call.1} parent=1 // pred_region
      %396 = dma.done [#allocation8], 16
    $region41: #{tpu_custom_call.1} parent=1 // pred_fallthru
      _
    %397 = vsyncpa [#allocation8], 1

</llo_original>
